<compile_context>
chip_gen: v7x
topology: tpu7x:2x2x1
jax: 0.10.0
libtpu: 0.0.40
codegen_flags: <defaults>
</compile_context>

<pallas_src>
import jax
import jax.numpy as jnp
from jax.experimental import pallas as pl
from jax.experimental.pallas import tpu as pltpu


def _ewa_kernel(q_ref, x1_ref, x2_ref, o_ref):
    # q_ref: (S, L) tile (folded q, broadcast over batch row-groups).
    # x1_ref/x2_ref/o_ref: (B*S, L) tiles.
    q = q_ref[...].astype(jnp.float32)
    x1 = x1_ref[...].astype(jnp.float32)
    x2 = x2_ref[...].astype(jnp.float32)

    reps = x1.shape[0] // q.shape[0]
    if reps > 1:
        # Broadcast q across the B row-groups of the sublane-folded layout.
        q = jnp.tile(q, (reps, 1))

    diff = x1 - x2
    # 2-way softmax == sigmoid:
    #   w1 = exp(d1) / (exp(d1) + exp(d2)) = sigmoid(q * (x1 - x2))
    # and sigmoid(z) = 0.5 * (1 + tanh(z/2))  -> one EUP op, no VALU divide.
    w1 = 0.5 * (1.0 + jnp.tanh(0.5 * (q * diff)))
    # out = w1*x1 + (1-w1)*x2 = x2 + w1*(x1-x2)
    o_ref[...] = (x2 + w1 * diff).astype(o_ref.dtype)


def _round_up(x, m):
    return (x + m - 1) // m * m


def _tpu_defaults():
    """Per-generation (target_block_bytes, vmem_limit_bytes); best-effort."""
    kind = ""
    try:
        kind = jax.devices()[0].device_kind.lower()
    except Exception:
        pass
    if "v6" in kind:
        # 128 MiB physical VMEM: larger blocks, higher limit -> lower per-step
        # overhead on the ~1.4 TB/s roofline.
        return 4 << 20, 64 << 20
    # v5e (16 MiB scoped default -> explicit limit matters) and v7x
    # (64 MiB physical, 32 MiB scoped default): conservative settings.
    return 2 << 20, 32 << 20


def _pick_lane_tile(rows_x_phys, rows_q_phys, lfull, itemsize,
                    target_block_bytes, vmem_budget_bytes):
    """Pick lane-tile L (multiple of 128, dividing lfull) sized by *physical*
    (sublane-padded) bytes, accounting for 4 operands x 2-deep pipelining."""
    # Tiny problem or awkward lane extent: one full-extent block.
    total_phys = (3 * rows_x_phys + rows_q_phys) * lfull * itemsize
    if lfull % 128 != 0 or lfull < 256 or total_phys <= (1 << 20):
        return lfull

    per128_x = rows_x_phys * 128 * itemsize                      # one x block, per 128 lanes
    per128_all = 2 * (3 * rows_x_phys + rows_q_phys) * 128 * itemsize  # all bufs, double-buffered

    want = max(target_block_bytes // per128_x, 1)
    cap = max(vmem_budget_bytes // per128_all, 1)
    n128 = lfull // 128
    chunks = int(min(want, cap, n128))

    L = max(chunks, 1) * 128
    while lfull % L != 0:          # L must divide lfull; 128 always does.
        L -= 128

    # Prefer an even number of grid steps (load-balances v7x's two TCs).
    n = lfull // L
    if n > 1 and n % 2 == 1 and L % 256 == 0:
        L //= 2
    return L


def element_wise_attention(q, x1, x2, *, target_block_bytes=None,
                           vmem_limit_bytes=None):
    """q: (1, C, H, W); x1, x2: (B, C, H, W) -> (B, C, H, W)."""
    B, C, H, W = x1.shape
    assert x2.shape == x1.shape and q.shape == (1, C, H, W)
    CHW = C * H * W
    dtype = x1.dtype
    itemsize = jnp.dtype(dtype).itemsize
    sub = max(8 * (4 // itemsize), 8)   # sublanes per vreg: 8 f32, 16 bf16

    if target_block_bytes is None or vmem_limit_bytes is None:
        tb, vl = _tpu_defaults()
        target_block_bytes = target_block_bytes or tb
        vmem_limit_bytes = vmem_limit_bytes or vl

    # Sublane-dense fold: (B, CHW) -> (B*S, CHW/S) so small batches still fill
    # all sublanes of each vreg (and q folds to (S, CHW/S)).
    S = 1
    if B < sub and sub % B == 0:
        s_cand = sub // B
        if CHW % s_cand == 0 and (CHW // s_cand) % 128 == 0:
            S = s_cand
    R = B * S
    lfull = CHW // S

    q2 = q.reshape(S, lfull)
    x1_2 = x1.reshape(R, lfull)
    x2_2 = x2.reshape(R, lfull)

    rows_x_phys = _round_up(R, sub)
    rows_q_phys = _round_up(S, sub)
    L = _pick_lane_tile(rows_x_phys, rows_q_phys, lfull, itemsize,
                        target_block_bytes, (vmem_limit_bytes * 3) // 4)
    num_tiles = lfull // L

    cost = pl.CostEstimate(
        flops=6 * B * CHW,
        transcendentals=B * CHW,
        bytes_accessed=(3 * B * CHW + CHW) * itemsize,
    )

    out = pl.pallas_call(
        _ewa_kernel,
        out_shape=jax.ShapeDtypeStruct((R, lfull), dtype),
        grid_spec=pltpu.PrefetchScalarGridSpec(
            num_scalar_prefetch=0,
            grid=(num_tiles,),
            in_specs=[
                pl.BlockSpec((S, L), lambda t: (0, t)),  # q (broadcast over B)
                pl.BlockSpec((R, L), lambda t: (0, t)),  # x1
                pl.BlockSpec((R, L), lambda t: (0, t)),  # x2
            ],
            out_specs=pl.BlockSpec((R, L), lambda t: (0, t)),
        ),
        compiler_params=pltpu.CompilerParams(
            dimension_semantics=("parallel",),
            vmem_limit_bytes=vmem_limit_bytes,
        ),
        cost_estimate=cost,
    )(q2, x1_2, x2_2)

    return out.reshape(B, C, H, W)


def _reference(q, x1, x2):
    d1 = q * x1
    d2 = q * x2
    ds = jnp.stack([d1, d2], axis=0)
    w = jax.nn.softmax(ds, axis=0)
    return w[0] * x1 + w[1] * x2


# TODO(synk): the rest of HCVARR (conv/BN perception nets, ResBlocks, Swin
# transformer, MLP head) is standard XLA territory and is not re-implemented
# as Pallas kernels here; only element_wise_attention is kernelized.

if __name__ == "__main__":
    # Small shapes consistent with the module: dim = (B, C, H, W)
    B, C, H, W = 2, 4, 16, 16

    key = jax.random.PRNGKey(0)
    kq, k1, k2 = jax.random.split(key, 3)

    # Deterministic kaiming_normal_ init for q (fan_in = C*H*W, gain=sqrt(2)).
    fan_in = C * H * W
    std = (2.0 / fan_in) ** 0.5
    q = jax.random.normal(kq, (1, C, H, W), dtype=jnp.float32) * std

    x1 = jax.random.normal(k1, (B, C, H, W), dtype=jnp.float32)
    x2 = jax.random.normal(k2, (B, C, H, W), dtype=jnp.float32)

    out = element_wise_attention(q, x1, x2)
    out = jax.block_until_ready(out)

    ref = _reference(q, x1, x2)
    assert out.shape == (B, C, H, W)
    err = float(jnp.max(jnp.abs(out - ref)))
    assert jnp.allclose(out, ref, atol=1e-4, rtol=1e-4), err

    print("KERNEL_OK")
</pallas_src>

<mosaic_0001>
module attributes {stable_mosaic.version = 11 : i64} {
  func.func @_ewa_kernel(%arg0: i32, %arg1: memref<4x256xf32, #tpu.memory_space<vmem>>, %arg2: memref<8x256xf32, #tpu.memory_space<vmem>>, %arg3: memref<8x256xf32, #tpu.memory_space<vmem>>, %arg4: memref<8x256xf32, #tpu.memory_space<vmem>>) attributes {dimension_semantics = [#tpu.dimension_semantics<parallel>], iteration_bounds = array<i64: 1>, scalar_prefetch = 0 : i64, scratch_operands = 0 : i64, tpu.core_type = #tpu.core_type<tc>, window_params = [{transform_indices = @transform_0, window_bounds = array<i64: 4, 256>}, {transform_indices = @transform_1, window_bounds = array<i64: 8, 256>}, {transform_indices = @transform_2, window_bounds = array<i64: 8, 256>}, {transform_indices = @transform_3, window_bounds = array<i64: 8, 256>}]} {
    %c0 = arith.constant 0 : index
    %c0_0 = arith.constant 0 : index
    %0 = vector.load %arg1[%c0, %c0_0] : memref<4x256xf32, #tpu.memory_space<vmem>>, vector<4x256xf32>
    %c0_1 = arith.constant 0 : index
    %c0_2 = arith.constant 0 : index
    %1 = vector.load %arg2[%c0_1, %c0_2] : memref<8x256xf32, #tpu.memory_space<vmem>>, vector<8x256xf32>
    %c0_3 = arith.constant 0 : index
    %c0_4 = arith.constant 0 : index
    %2 = vector.load %arg3[%c0_3, %c0_4] : memref<8x256xf32, #tpu.memory_space<vmem>>, vector<8x256xf32>
    %3 = tpu.concatenate %0, %0 in 0 : vector<4x256xf32>, vector<4x256xf32> -> vector<8x256xf32>
    %4 = arith.subf %1, %2 : vector<8x256xf32>
    %5 = arith.mulf %3, %4 : vector<8x256xf32>
    %cst = arith.constant 5.000000e-01 : f32
    %6 = vector.broadcast %cst : f32 to vector<8x256xf32>
    %7 = arith.mulf %6, %5 : vector<8x256xf32>
    %8 = math.tanh %7 : vector<8x256xf32>
    %cst_5 = arith.constant 1.000000e+00 : f32
    %9 = vector.broadcast %cst_5 : f32 to vector<8x256xf32>
    %10 = arith.addf %9, %8 : vector<8x256xf32>
    %cst_6 = arith.constant 5.000000e-01 : f32
    %11 = vector.broadcast %cst_6 : f32 to vector<8x256xf32>
    %12 = arith.mulf %11, %10 : vector<8x256xf32>
    %13 = arith.mulf %12, %4 : vector<8x256xf32>
    %14 = arith.addf %2, %13 : vector<8x256xf32>
    %c0_7 = arith.constant 0 : index
    %c0_8 = arith.constant 0 : index
    %15 = vector.load %arg4[%c0_7, %c0_8] : memref<8x256xf32, #tpu.memory_space<vmem>>, vector<8x256xf32>
    tpu.vector_store %arg4[%c0_7, %c0_8], %14 {strides = array<i32>} : memref<8x256xf32, #tpu.memory_space<vmem>>, vector<8x256xf32>,
    return
  }
  func.func @transform_0(%arg0: i32) -> (i32, i32) {
    %c0_i32 = arith.constant 0 : i32
    %c0_i32_0 = arith.constant 0 : i32
    return %c0_i32, %arg0 : i32, i32
  }
  func.func @transform_1(%arg0: i32) -> (i32, i32) {
    %c0_i32 = arith.constant 0 : i32
    %c0_i32_0 = arith.constant 0 : i32
    return %c0_i32, %arg0 : i32, i32
  }
  func.func @transform_2(%arg0: i32) -> (i32, i32) {
    %c0_i32 = arith.constant 0 : i32
    %c0_i32_0 = arith.constant 0 : i32
    return %c0_i32, %arg0 : i32, i32
  }
  func.func @transform_3(%arg0: i32) -> (i32, i32) {
    %c0_i32 = arith.constant 0 : i32
    %c0_i32_0 = arith.constant 0 : i32
    return %c0_i32, %arg0 : i32, i32
  }
}

</mosaic_0001>

<llo_original>
// kernel: tpu_custom_call.1
$region0: #{tpu_custom_call.1}
  #allocation0 [shape = 'u32[]', space=smem, size = 0x4, offset = 0x4, fixed_abs, tag = 'smem constant byte address 0x4 - core index']
  #allocation1 [shape = 'u32[144,128]{1,0:T(1,128)}', space=vmem, size = 0x12000, scoped, tag = 'internal scratch']
  %s0 = inlined_call_operand.hbm [shape: f32[4,256], index: 0, kind: input, shape index: {}]
  %s1 = inlined_call_operand.hbm [shape: f32[8,256], index: 1, kind: input, shape index: {}]
  %s2 = inlined_call_operand.hbm [shape: f32[8,256], index: 2, kind: input, shape index: {}]
  %s3 = inlined_call_operand.hbm [shape: f32[8,256], index: 3, kind: output, shape index: {}]
  %s4 = sld [smem:[#allocation0]]
  $region34: #{tpu_custom_call.1} parent=0
    _
  %s6 = ssub.s32 1, %s4
  %s7 = scalar_select 0, %s6, %s4
  $region1: #{tpu_custom_call.1} parent=0
    #allocation2 [shape = 'u8[4096]{0}', space=vmem, size = 0x1000, scoped, tag = 'input window, operand 0, single buffered']
    #allocation3 [shape = 's32[1]{0}', space=sflag, size = 0x4, scoped, tag = 'scoped memory for tpu_custom_call.1']
    #allocation4 [shape = 's32[1]{0}', space=sflag, size = 0x4, scoped, tag = 'scoped memory for tpu_custom_call.1']
    #allocation5 [shape = 'u8[8192]{0}', space=vmem, size = 0x2000, scoped, tag = 'input window, operand 1, single buffered']
    #allocation6 [shape = 's32[1]{0}', space=sflag, size = 0x4, scoped, tag = 'scoped memory for tpu_custom_call.1']
    #allocation7 [shape = 'u8[8192]{0}', space=vmem, size = 0x2000, scoped, tag = 'input window, operand 2, single buffered']
    #allocation8 [shape = 'u8[8192]{0}', space=vmem, size = 0x2000, scoped, tag = 'output window, operand 0, single buffered']
    %8 = vsyncpa [#allocation3], 0
    %9 = vsyncpa [#allocation6], 0
    %10 = vsyncpa [#allocation4], 0
    // Predicated region
    $region2: #{tpu_custom_call.1} parent=1 // pred_check
      _
    $region3: #{tpu_custom_call.1} parent=1 // pred_check_branch
      %12 = sbr.rel (0) target = $region5
    $region4: #{tpu_custom_call.1} parent=1 // pred_region
      %s14 = ssub.s32 128, 128
      %15 = vsyncadd [#allocation3], %s14
      %s17 = sshll.u32 [#allocation2], 4
      %s18 = int_to_ptr.vmem [resolvable:$true] %s17
      %20 = dma.hbm_to_vmem [thread:$0]  %s0, 128, %s18, [#allocation3]
    $region5: #{tpu_custom_call.1} parent=1 // pred_fallthru
      _
    // Predicated region
    $region6: #{tpu_custom_call.1} parent=1 // pred_check
      _
    $region7: #{tpu_custom_call.1} parent=1 // pred_check_branch
      %22 = sbr.rel (0) target = $region9
    $region8: #{tpu_custom_call.1} parent=1 // pred_region
      %s24 = ssub.s32 256, 256
      %25 = vsyncadd [#allocation6], %s24
      %s27 = sshll.u32 [#allocation5], 4
      %s28 = int_to_ptr.vmem [resolvable:$true] %s27
      %30 = dma.hbm_to_vmem [thread:$0]  %s1, 256, %s28, [#allocation6]
    $region9: #{tpu_custom_call.1} parent=1 // pred_fallthru
      _
    // Predicated region
    $region10: #{tpu_custom_call.1} parent=1 // pred_check
      _
    $region11: #{tpu_custom_call.1} parent=1 // pred_check_branch
      %32 = sbr.rel (0) target = $region13
    $region12: #{tpu_custom_call.1} parent=1 // pred_region
      %s34 = ssub.s32 256, 256
      %35 = vsyncadd [#allocation6], %s34
      %s37 = sshll.u32 [#allocation7], 4
      %s38 = int_to_ptr.vmem [resolvable:$true] %s37
      %40 = dma.hbm_to_vmem [thread:$0]  %s2, 256, %s38, [#allocation6]
    $region13: #{tpu_custom_call.1} parent=1 // pred_fallthru
      _
    // Predicated region
    $region14: #{tpu_custom_call.1} parent=1 // pred_check
      _
    $region15: #{tpu_custom_call.1} parent=1 // pred_check_branch
      %42 = sbr.rel (0) target = $region17
    $region16: #{tpu_custom_call.1} parent=1 // pred_region
      %43 = dma.done [#allocation3], 128
    $region17: #{tpu_custom_call.1} parent=1 // pred_fallthru
      _
    // Predicated region
    $region18: #{tpu_custom_call.1} parent=1 // pred_check
      _
    $region19: #{tpu_custom_call.1} parent=1 // pred_check_branch
      %45 = sbr.rel (0) target = $region21
    $region20: #{tpu_custom_call.1} parent=1 // pred_region
      %46 = dma.done [#allocation6], 256
    $region21: #{tpu_custom_call.1} parent=1 // pred_fallthru
      _
    // Predicated region
    $region22: #{tpu_custom_call.1} parent=1 // pred_check
      _
    $region23: #{tpu_custom_call.1} parent=1 // pred_check_branch
      %48 = sbr.rel (0) target = $region25
    $region24: #{tpu_custom_call.1} parent=1 // pred_region
      %49 = dma.done [#allocation6], 256
    $region25: #{tpu_custom_call.1} parent=1 // pred_fallthru
      _
    %v50 = vld [vmem:[#allocation2] sm:$0xff]
    %v51 = vld [vmem:[#allocation5] sm:$0xff]
    %v52 = vld [vmem:[#allocation5 + $0x8] sm:$0xff]
    %v53 = vld [vmem:[#allocation7] sm:$0xff]
    %v54 = vld [vmem:[#allocation7 + $0x8] sm:$0xff]
    %v56 = vcombine.high %v50, %v50
    %v58 = vcombine.low %v50, %v50
    %vm60 = vcmask 1043456
    %v61 = vsel %vm60, %v50, %v58
    %v62 = vsel %vm60, %v56, %v50
    %v63 = vsub.f32 %v51, %v53
    %v64 = vsub.f32 %v52, %v54
    %v65 = vmul.f32 %v61, %v63
    %v66 = vmul.f32 %v62, %v64
    %v67 = vmul.f32 %v65, 0.5
    %v68 = vmul.f32 %v66, 0.5
    %v69 = vtanh.pop %v67
    %v70 = vtanh.pop %v68
    %v71 = vadd.f32 %v69, 1.0
    %v72 = vadd.f32 %v70, 1.0
    %v73 = vmul.f32 %v71, 0.5
    %v74 = vmul.f32 %v72, 0.5
    %v75 = vmul.f32 %v73, %v63
    %v76 = vmul.f32 %v74, %v64
    %v77 = vadd.f32 %v53, %v75
    %v78 = vadd.f32 %v54, %v76
    %79 = vst [vmem:[#allocation8] sm:$0xff] %v77
    %80 = vst [vmem:[#allocation8 + $0x8] sm:$0xff] %v78
    // Predicated region
    $region26: #{tpu_custom_call.1} parent=1 // pred_check
      _
    $region27: #{tpu_custom_call.1} parent=1 // pred_check_branch
      %82 = sbr.rel (0) target = $region29
    $region28: #{tpu_custom_call.1} parent=1 // pred_region
      %s84 = ssub.s32 256, 256
      %85 = vsyncadd [#allocation4], %s84
      %s87 = sshll.u32 [#allocation8], 4
      %s88 = int_to_ptr.vmem [resolvable:$true] %s87
      %90 = dma.vmem_to_hbm [thread:$0]  %s88, 256, %s3, [#allocation4]
    $region29: #{tpu_custom_call.1} parent=1 // pred_fallthru
      _
    // Predicated region
    $region30: #{tpu_custom_call.1} parent=1 // pred_check
      _
    $region31: #{tpu_custom_call.1} parent=1 // pred_check_branch
      %92 = sbr.rel (0) target = $region33
    $region32: #{tpu_custom_call.1} parent=1 // pred_region
      %93 = dma.done [#allocation4], 256
    $region33: #{tpu_custom_call.1} parent=1 // pred_fallthru
      _
    %94 = vsyncpa [#allocation3], 1
    %95 = vsyncpa [#allocation6], 1
    %96 = vsyncpa [#allocation4], 1

</llo_original>
